<compile_context>
chip_gen: v5e
topology: v5e:2x2
jax: 0.10.0
libtpu: 0.0.40
codegen_flags: <defaults>
</compile_context>

<pallas_src>
import functools

import jax
import jax.numpy as jnp
from jax.experimental import pallas as pl
from jax.experimental.pallas import tpu as pltpu


def _round_up(x: int, m: int) -> int:
    return ((x + m - 1) // m) * m


def _vmem_budget(block_budget_bytes=None):
    """Generation-aware (vmem_limit_bytes, per-input-buffer block budget)."""
    try:
        cap = int(pltpu.get_tpu_info().vmem_capacity_bytes)
    except Exception:
        cap = 64 * 1024 * 1024                      # conservative fallback: v7x physical VMEM
    limit = min(cap // 2, 64 * 1024 * 1024)          # 64 MiB on v5e/v6e, 32 MiB on v7x
    budget = limit // 4                              # 2 in-flight input buffers + acc + headroom
    if block_budget_bytes is not None:
        budget = min(budget, int(block_budget_bytes))
    return limit, max(budget, 1)


def _emb_tile(D: int, want_split: bool):
    """(Dt, Dg): full-extent D when a split is not needed/possible, otherwise a
    multiple-of-128 tile giving >= 2 blocks (feeds v7x's second TensorCore)."""
    d_lanes = pl.cdiv(D, 128)
    if not want_split or d_lanes < 2:
        return D, 1
    Dt = 128 * ((d_lanes + 1) // 2)
    return Dt, pl.cdiv(D, Dt)


# ---------------------------------------------------------------------------
# Kernel 1: tiled reduction over the sequence axis: [B, S, D] -> [B, D]
# ---------------------------------------------------------------------------
def _bow_reduce_kernel(x_ref, o_ref, acc_ref, *, inv_len, seq_len, seq_tile, mask_tail):
    s = pl.program_id(2)  # sequence (reduction) axis is the last grid axis

    @pl.when(s == 0)
    def _():
        acc_ref[...] = jnp.zeros_like(acc_ref)

    # f32 accumulation (exact for bf16 inputs; v5e VPU has no native bf16).
    x = x_ref[...].astype(jnp.float32)
    if mask_tail:
        # Only the ragged last sequence block can contain garbage sublanes (OOB
        # reads); zero them before they reach the accumulator.  Static no-op
        # (not emitted) when St divides S.
        pos = s * seq_tile + jax.lax.broadcasted_iota(
            jnp.int32, (x.shape[1], x.shape[2]), 0)
        x = jnp.where((pos < seq_len)[None, :, :], x, 0.0)
    acc_ref[...] += jnp.sum(x, axis=1)

    @pl.when(s == pl.num_programs(2) - 1)
    def _():
        o_ref[...] = (acc_ref[...] * inv_len).astype(o_ref.dtype)


def bow_encode(embeddings: jax.Array,
               aggregation_type: str = "sum",
               dropout_value: float = 0.0,
               *,
               block_budget_bytes=None) -> jax.Array:
    """Bag-of-words aggregation over the sequence dim: [B, S, D] -> [B, D]."""
    assert aggregation_type in ("sum", "average")
    # TODO(synk): training-mode dropout (p > 0) not implemented; dropout_value=0
    # (and PyTorch eval mode) makes nn.Dropout an identity, which is what we model.
    del dropout_value

    B, S, D = map(int, embeddings.shape)
    out_dtype = embeddings.dtype
    itemsize = jnp.dtype(out_dtype).itemsize

    vmem_limit, budget = _vmem_budget(block_budget_bytes)

    # Batch tile: whole batch if small, else 8-row tiles.  The ragged last batch
    # block reads garbage rows; their results land in over-allocated output rows
    # that are sliced off below (batches are independent -> safe).
    Bt = B if B <= 8 else 8
    Bg = pl.cdiv(B, Bt)

    # Emb-dim tile: split only when the batch axis gives no parallelism, so v7x
    # always sees a "parallel" grid axis with >= 2 iterations when possible.
    Dt, Dg = _emb_tile(D, want_split=(Bg < 2))

    # Sequence (reduction) tile from the per-buffer VMEM budget (multiple of 8).
    row_bytes = max(Bt * Dt * itemsize, 1)
    st_budget = max(8, (budget // row_bytes) // 8 * 8)
    if S <= st_budget:
        St, Sg = S, 1
    else:
        St, Sg = st_budget, pl.cdiv(S, st_budget)

    inv_len = 1.0 if aggregation_type == "sum" else 1.0 / float(S)
    kernel = functools.partial(_bow_reduce_kernel, inv_len=inv_len, seq_len=S,
                               seq_tile=St, mask_tail=(S % St != 0))

    out_rows = Bg * Bt      # tiny over-allocation instead of padding the [B,S,D] input
    out_cols = Dg * Dt

    cost = pl.CostEstimate(
        flops=B * S * D,
        transcendentals=0,
        bytes_accessed=B * S * D * itemsize + B * D * itemsize,  # true (unpadded) traffic
    )

    out = pl.pallas_call(
        kernel,
        out_shape=jax.ShapeDtypeStruct((out_rows, out_cols), out_dtype),
        grid_spec=pltpu.PrefetchScalarGridSpec(
            num_scalar_prefetch=0,
            grid=(Bg, Dg, Sg),
            in_specs=[pl.BlockSpec((Bt, St, Dt), lambda b, d, s: (b, s, d))],
            # Output block index constant along the seq axis -> accumulator-resident.
            out_specs=pl.BlockSpec((Bt, Dt), lambda b, d, s: (b, d)),
            scratch_shapes=[pltpu.VMEM((Bt, Dt), jnp.float32)],
        ),
        compiler_params=pltpu.CompilerParams(
            dimension_semantics=("parallel", "parallel", "arbitrary"),
            vmem_limit_bytes=vmem_limit,
        ),
        cost_estimate=cost,
    )(embeddings)

    if out_rows != B or out_cols != D:
        out = out[:B, :D]
    return out


# ---------------------------------------------------------------------------
# Kernel 2 (fused, small-vocab path): BOW sum == counts[B,V] @ table[V,D] on MXU
# ---------------------------------------------------------------------------
def _counts_matmul_kernel(c_ref, t_ref, o_ref, acc_ref, *, inv_len, vocab,
                          vocab_tile, mask_tail):
    k = pl.program_id(1)  # vocab (reduction) axis is the last grid axis

    @pl.when(k == 0)
    def _():
        acc_ref[...] = jnp.zeros_like(acc_ref)

    # Upcast the table block in-kernel (bf16 tables stay bf16 in HBM) and zero
    # the ragged vocab-tail rows so OOB garbage never reaches the MXU accumulator.
    t = t_ref[...].astype(jnp.float32)
    if mask_tail:
        rows = k * vocab_tile + jax.lax.broadcasted_iota(jnp.int32, t.shape, 0)
        t = jnp.where(rows < vocab, t, 0.0)
    acc_ref[...] += jnp.dot(c_ref[...], t, preferred_element_type=jnp.float32)

    @pl.when(k == pl.num_programs(1) - 1)
    def _():
        o_ref[...] = (acc_ref[...] * inv_len).astype(o_ref.dtype)


def bow_encode_fused(tokens: jax.Array,
                     table: jax.Array,
                     aggregation_type: str = "sum",
                     dropout_value: float = 0.0,
                     *,
                     vocab_tile: int = 2048,
                     block_budget_bytes=None) -> jax.Array:
    """Fused embedder+BOW: out[b] = sum_s table[tokens[b, s]] (or mean).

    Only worthwhile for small vocabularies (V <~ B*S); it streams the whole table.
    """
    assert aggregation_type in ("sum", "average")
    del dropout_value  # identity at p=0 / eval mode

    B, S = map(int, tokens.shape)
    V, D = map(int, table.shape)
    out_dtype = table.dtype
    t_itemsize = jnp.dtype(out_dtype).itemsize

    vmem_limit, budget = _vmem_budget(block_budget_bytes)

    # Emb-dim split gives a >1-iteration "parallel" axis for v7x (vocab is the
    # reduction and must stay "arbitrary").
    Dt, Dg = _emb_tile(D, want_split=True)

    # Vocab (reduction) tile: large (amortizes the ~0.35us grid-step overhead and
    # keeps the HBM stream long) but capped so double-buffered table blocks fit.
    vt_cap = max(128, (budget // max(Dt * t_itemsize, 1)) // 128 * 128)
    Vt = min(_round_up(max(int(vocab_tile), 128), 128), vt_cap)
    if V <= Vt:
        Vt, Vg = V, 1
    else:
        Vg = pl.cdiv(V, Vt)
    Vp = Vg * Vt

    # Per-batch token counts via scatter-add, built directly at the padded vocab
    # width: no [B, S, V] one_hot blow-up, no separate pad pass, exact in f32.
    batch_idx = jnp.arange(B, dtype=jnp.int32)[:, None]
    counts = jnp.zeros((B, Vp), jnp.float32).at[batch_idx, tokens].add(1.0)

    inv_len = 1.0 if aggregation_type == "sum" else 1.0 / float(S)
    kernel = functools.partial(_counts_matmul_kernel, inv_len=inv_len, vocab=V,
                               vocab_tile=Vt, mask_tail=(V % Vt != 0))

    out_cols = Dg * Dt
    cost = pl.CostEstimate(
        flops=2 * B * V * D,
        transcendentals=0,
        bytes_accessed=B * Vp * 4 + V * D * t_itemsize + B * D * t_itemsize,
    )

    out = pl.pallas_call(
        kernel,
        out_shape=jax.ShapeDtypeStruct((B, out_cols), out_dtype),
        grid_spec=pltpu.PrefetchScalarGridSpec(
            num_scalar_prefetch=0,
            grid=(Dg, Vg),
            in_specs=[pl.BlockSpec((B, Vt), lambda d, k: (0, k)),
                      pl.BlockSpec((Vt, Dt), lambda d, k: (k, d))],
            out_specs=pl.BlockSpec((B, Dt), lambda d, k: (0, d)),
            scratch_shapes=[pltpu.VMEM((B, Dt), jnp.float32)],
        ),
        compiler_params=pltpu.CompilerParams(
            dimension_semantics=("parallel", "arbitrary"),
            vmem_limit_bytes=vmem_limit,
        ),
        cost_estimate=cost,
    )(counts, table)

    if out_cols != D:
        out = out[:, :D]
    return out


if __name__ == "__main__":
    key = jax.random.PRNGKey(0)
    k_tab, k_tok, k_emb = jax.random.split(key, 3)

    # --- Case 1: small, block-aligned shapes (typical module use).
    B, S, D, V = 2, 8, 32, 50
    table = jax.random.normal(k_tab, (V, D), dtype=jnp.float32)   # embedder table [V, D]
    tokens = jax.random.randint(k_tok, (B, S), 0, V)              # token ids   [B, S]
    embeddings = table[tokens]                                    # embedder output [B, S, D]

    out_sum = bow_encode(embeddings, "sum")
    out_avg = bow_encode(embeddings, "average")
    fused_sum = bow_encode_fused(tokens, table, "sum")
    fused_avg = bow_encode_fused(tokens, table, "average")

    ref_sum = jnp.sum(embeddings, axis=1)
    ref_avg = jnp.mean(embeddings, axis=1)
    assert out_sum.shape == (B, D) and out_avg.shape == (B, D)
    assert jnp.allclose(out_sum, ref_sum, atol=1e-5, rtol=1e-5)
    assert jnp.allclose(out_avg, ref_avg, atol=1e-5, rtol=1e-5)
    assert jnp.allclose(fused_sum, ref_sum, atol=1e-4, rtol=1e-4)
    assert jnp.allclose(fused_avg, ref_avg, atol=1e-4, rtol=1e-4)

    # --- Case 2: ragged batch/seq/emb extents with a forced multi-block sequence
    # reduction (exercises the in-kernel seq-tail mask; no host-side padding).
    B2, S2, D2 = 5, 13, 40
    emb2 = jax.random.normal(k_emb, (B2, S2, D2), dtype=jnp.float32)
    got2 = bow_encode(emb2, "average", block_budget_bytes=4096)   # St=8 -> 2 seq blocks
    assert got2.shape == (B2, D2)
    assert jnp.allclose(got2, jnp.mean(emb2, axis=1), atol=1e-5, rtol=1e-5)

    # --- Case 3: emb dim split into two "parallel" tiles (v7x two-TC path) and a
    # multi-tile vocab reduction with a masked ragged vocab tail (fused kernel).
    B3, S3, D3, V3 = 4, 16, 320, 600
    table3 = jax.random.normal(k_tab, (V3, D3), dtype=jnp.float32)
    tokens3 = jax.random.randint(k_tok, (B3, S3), 0, V3)
    emb3 = table3[tokens3]
    got3 = bow_encode(emb3, "sum")
    fused3 = bow_encode_fused(tokens3, table3, "sum", vocab_tile=256)
    ref3 = jnp.sum(emb3, axis=1)
    assert got3.shape == (B3, D3) and fused3.shape == (B3, D3)
    assert jnp.allclose(got3, ref3, atol=1e-4, rtol=1e-4)
    assert jnp.allclose(fused3, ref3, atol=1e-3, rtol=1e-3)

    for o in (out_sum, out_avg, fused_sum, fused_avg, got2, got3, fused3):
        jax.block_until_ready(o)
    print("KERNEL_OK")
</pallas_src>

<mosaic_0001>
module attributes {stable_mosaic.version = 11 : i64} {
  func.func @_bow_reduce_kernel(%arg0: i32, %arg1: i32, %arg2: i32, %arg3: memref<2x8x32xf32, #tpu.memory_space<vmem>>, %arg4: memref<2x32xf32, #tpu.memory_space<vmem>>, %arg5: memref<2x32xf32, #tpu.memory_space<vmem>>) attributes {dimension_semantics = [#tpu.dimension_semantics<parallel>, #tpu.dimension_semantics<parallel>, #tpu.dimension_semantics<arbitrary>], iteration_bounds = array<i64: 1, 1, 1>, scalar_prefetch = 0 : i64, scratch_operands = 1 : i64, tpu.core_type = #tpu.core_type<tc>, window_params = [{transform_indices = @transform_0, window_bounds = array<i64: 2, 8, 32>}, {transform_indices = @transform_1, window_bounds = array<i64: 2, 32>}]} {
    %c0_i32 = arith.constant 0 : i32
    %0 = arith.cmpi eq, %arg2, %c0_i32 : i32
    %1 = arith.extui %0 : i1 to i32
    %c0_i32_0 = arith.constant 0 : i32
    %2 = arith.cmpi ne, %1, %c0_i32_0 : i32
    scf.if %2 {
      %cst_9 = arith.constant 0.000000e+00 : f32
      %11 = vector.broadcast %cst_9 : f32 to vector<2x32xf32>
      %c0_10 = arith.constant 0 : index
      %c0_11 = arith.constant 0 : index
      %12 = vector.load %arg5[%c0_10, %c0_11] : memref<2x32xf32, #tpu.memory_space<vmem>>, vector<2x32xf32>
      tpu.vector_store %arg5[%c0_10, %c0_11], %11 {strides = array<i32>} : memref<2x32xf32, #tpu.memory_space<vmem>>, vector<2x32xf32>,
    } else {
    }
    %c0 = arith.constant 0 : index
    %c0_1 = arith.constant 0 : index
    %c0_2 = arith.constant 0 : index
    %3 = vector.load %arg3[%c0, %c0_1, %c0_2] : memref<2x8x32xf32, #tpu.memory_space<vmem>>, vector<2x8x32xf32>
    %c0_3 = arith.constant 0 : index
    %c0_4 = arith.constant 0 : index
    %4 = vector.load %arg5[%c0_3, %c0_4] : memref<2x32xf32, #tpu.memory_space<vmem>>, vector<2x32xf32>
    %cst = arith.constant dense<0.000000e+00> : vector<2x32xf32>
    %5 = vector.multi_reduction <add>, %3, %cst [1] : vector<2x8x32xf32> to vector<2x32xf32>
    %6 = arith.addf %4, %5 : vector<2x32xf32>
    %c0_5 = arith.constant 0 : index
    %c0_6 = arith.constant 0 : index
    %7 = vector.load %arg5[%c0_5, %c0_6] : memref<2x32xf32, #tpu.memory_space<vmem>>, vector<2x32xf32>
    tpu.vector_store %arg5[%c0_5, %c0_6], %6 {strides = array<i32>} : memref<2x32xf32, #tpu.memory_space<vmem>>, vector<2x32xf32>,
    %c0_i32_7 = arith.constant 0 : i32
    %8 = arith.cmpi eq, %arg2, %c0_i32_7 : i32
    %9 = arith.extui %8 : i1 to i32
    %c0_i32_8 = arith.constant 0 : i32
    %10 = arith.cmpi ne, %9, %c0_i32_8 : i32
    scf.if %10 {
      %c0_9 = arith.constant 0 : index
      %c0_10 = arith.constant 0 : index
      %11 = vector.load %arg5[%c0_9, %c0_10] : memref<2x32xf32, #tpu.memory_space<vmem>>, vector<2x32xf32>
      %cst_11 = arith.constant 1.000000e+00 : f32
      %12 = vector.broadcast %cst_11 : f32 to vector<2x32xf32>
      %13 = arith.mulf %11, %12 : vector<2x32xf32>
      %c0_12 = arith.constant 0 : index
      %c0_13 = arith.constant 0 : index
      %14 = vector.load %arg4[%c0_12, %c0_13] : memref<2x32xf32, #tpu.memory_space<vmem>>, vector<2x32xf32>
      tpu.vector_store %arg4[%c0_12, %c0_13], %13 {strides = array<i32>} : memref<2x32xf32, #tpu.memory_space<vmem>>, vector<2x32xf32>,
    } else {
    }
    return
  }
  func.func @transform_0(%arg0: i32, %arg1: i32, %arg2: i32) -> (i32, i32, i32) {
    %c0_i32 = arith.constant 0 : i32
    return %arg0, %arg2, %arg1 : i32, i32, i32
  }
  func.func @transform_1(%arg0: i32, %arg1: i32, %arg2: i32) -> (i32, i32) {
    %c0_i32 = arith.constant 0 : i32
    return %arg0, %arg1 : i32, i32
  }
}

</mosaic_0001>

<llo_original>
// kernel: tpu_custom_call.1
$region0: #{tpu_custom_call.1}
  #allocation0 [shape = 'u32[]', space=smem, size = 0x4, offset = 0x4, fixed_abs, tag = 'smem constant byte address 0x4 - core index']
  #allocation1 [shape = 'u32[72,128]{1,0:T(1,128)}', space=vmem, size = 0x9000, scoped, tag = 'internal scratch']
  #allocation2 [shape = 'f32[2,32]{1,0:T(2,128)}', space=vmem, size = 0x400, scoped, tag = 'scratch operand']
  %s0 = inlined_call_operand.hbm [shape: f32[2,8,32], index: 0, kind: input, shape index: {}]
  %s1 = inlined_call_operand.hbm [shape: f32[2,32], index: 1, kind: output, shape index: {}]
  %s2 = sld [smem:[#allocation0]]
  $region26: #{tpu_custom_call.1} parent=0
    _
  %s4 = ssub.s32 1, %s2
  %s5 = scalar_select 0, %s4, %s2
  $region1: #{tpu_custom_call.1} parent=0
    #allocation3 [shape = 'u8[8192]{0}', space=vmem, size = 0x2000, scoped, tag = 'input window, operand 0, single buffered']
    #allocation4 [shape = 's32[1]{0}', space=sflag, size = 0x4, scoped, tag = 'scoped memory for tpu_custom_call.1']
    #allocation5 [shape = 's32[1]{0}', space=sflag, size = 0x4, scoped, tag = 'scoped memory for tpu_custom_call.1']
    #allocation6 [shape = 'u8[1024]{0}', space=vmem, size = 0x400, scoped, tag = 'output window, operand 0, single buffered']
    %6 = vsyncpa [#allocation4], 0
    %7 = vsyncpa [#allocation5], 0
    // Predicated region
    $region2: #{tpu_custom_call.1} parent=1 // pred_check
      _
    $region3: #{tpu_custom_call.1} parent=1 // pred_check_branch
      %9 = sbr.rel (0) target = $region5
    $region4: #{tpu_custom_call.1} parent=1 // pred_region
      %11 = vsyncadd [#allocation4], 0
      %s12 = sshll.u32 %s0, 4
      %s13 = int_to_ptr.hbm [resolvable:$true] %s12
      %s14 = sshll.u32 [#allocation3], 4
      %s15 = int_to_ptr.vmem [resolvable:$true] %s14
      %20 = dma.hbm_to_vmem [thread:$0]  %s13, 256, %s15, [#allocation4], 128, 128, 8
    $region5: #{tpu_custom_call.1} parent=1 // pred_fallthru
      _
    // Predicated region
    $region6: #{tpu_custom_call.1} parent=1 // pred_check
      _
    $region7: #{tpu_custom_call.1} parent=1 // pred_check_branch
      %22 = sbr.rel (0) target = $region9
    $region8: #{tpu_custom_call.1} parent=1 // pred_region
      %24 = dma.done [#allocation4], 256
    $region9: #{tpu_custom_call.1} parent=1 // pred_fallthru
      _
    %p25 = scmp.eq.s32.totalorder 0, 0
    // Predicated region
    $region10: #{tpu_custom_call.1} parent=1 // pred_check
      %p26 = pneg %p25
    $region11: #{tpu_custom_call.1} parent=1 // pred_check_branch
      %28 = sbr.rel (%p26) target = $region13
    $region12: #{tpu_custom_call.1} parent=1 // pred_region
      %vm29 = vcmask 254976
      %30 = vst.msk [vmem:[#allocation2] sm:$0x3] %vm29, 0.0
    $region13: #{tpu_custom_call.1} parent=1 // pred_fallthru
      _
    %v31 = vld [vmem:[#allocation3] sm:$0xff]
    %v32 = vld [vmem:[#allocation3 + $0x8] sm:$0xff]
    %v33 = vld [vmem:[#allocation2] sm:$0x3]
    %vm34 = vcmask 261120
    %v35 = vsel %vm34, %v31, 0.0
    %v36 = vrot.slane %v35, 4
    %v37 = vadd.f32 %v35, %v36
    %v38 = vrot.slane %v37, 2
    %v39 = vadd.f32 %v37, %v38
    %v40 = vrot.slane %v39, 1
    %v41 = vadd.f32 %v39, %v40
    %v42 = vsel %vm34, %v32, 0.0
    %v43 = vrot.slane %v42, 4
    %v44 = vadd.f32 %v42, %v43
    %v45 = vrot.slane %v44, 2
    %v46 = vadd.f32 %v44, %v45
    %v47 = vrot.slane %v46, 1
    %v48 = vadd.f32 %v46, %v47
    %vm51 = vcmask 1041409
    %v52 = vsel %vm51, %v48, %v41
    %v54 = vadd.f32 %v33, %v52
    %vm55 = vcmask 254976
    %56 = vst.msk [vmem:[#allocation2] sm:$0x3] %vm55, %v54
    // Predicated region
    $region14: #{tpu_custom_call.1} parent=1 // pred_check
      %p57 = pneg %p25
    $region15: #{tpu_custom_call.1} parent=1 // pred_check_branch
      %59 = sbr.rel (%p57) target = $region17
    $region16: #{tpu_custom_call.1} parent=1 // pred_region
      %v60 = vld [vmem:[#allocation2] sm:$0x3]
      %61 = vst.msk [vmem:[#allocation6] sm:$0x3] %vm55, %v60
    $region17: #{tpu_custom_call.1} parent=1 // pred_fallthru
      _
    // Predicated region
    $region18: #{tpu_custom_call.1} parent=1 // pred_check
      _
    $region19: #{tpu_custom_call.1} parent=1 // pred_check_branch
      %63 = sbr.rel (0) target = $region21
    $region20: #{tpu_custom_call.1} parent=1 // pred_region
      %65 = vsyncadd [#allocation5], 0
      %s67 = sshll.u32 [#allocation6], 4
      %s68 = int_to_ptr.vmem [resolvable:$true] %s67
      %s69 = sshll.u32 %s1, 4
      %s70 = int_to_ptr.hbm [resolvable:$true] %s69
      %72 = dma.vmem_to_hbm [thread:$0]  %s68, 32, %s70, [#allocation5]
    $region21: #{tpu_custom_call.1} parent=1 // pred_fallthru
      _
    // Predicated region
    $region22: #{tpu_custom_call.1} parent=1 // pred_check
      _
    $region23: #{tpu_custom_call.1} parent=1 // pred_check_branch
      %74 = sbr.rel (0) target = $region25
    $region24: #{tpu_custom_call.1} parent=1 // pred_region
      %76 = dma.done [#allocation5], 32
    $region25: #{tpu_custom_call.1} parent=1 // pred_fallthru
      _
    %77 = vsyncpa [#allocation4], 1
    %78 = vsyncpa [#allocation5], 1

</llo_original>
